<compile_context>
chip_gen: v7x
topology: tpu7x:2x2x1
jax: 0.10.0
libtpu: 0.0.40
codegen_flags: <defaults>
</compile_context>

<pallas_src>
import math
import jax
import jax.numpy as jnp
from jax.experimental import pallas as pl
from jax.experimental.pallas import tpu as pltpu


def adaptive_lstm_cell_kernel(xh_ref, c_ref, w_ref, b_ref, out_ref):
    H = c_ref.shape[1]

    # Single fused matmul on the MXU, f32 accumulation. Inputs stay in their
    # native dtype (bf16 inputs -> bf16 MXU path).
    gates = (
        jnp.dot(xh_ref[...], w_ref[...], preferred_element_type=jnp.float32)
        + b_ref[...]                       # (1, 5H) f32 bias row, broadcast
    )                                      # (block_b, 5H) f32

    i_g = jax.nn.sigmoid(gates[:, 0 * H:1 * H])
    f_g = jax.nn.sigmoid(gates[:, 1 * H:2 * H])
    g_g = jnp.tanh(gates[:, 2 * H:3 * H])
    o_g = jax.nn.sigmoid(gates[:, 3 * H:4 * H])
    sen = jax.nn.sigmoid(gates[:, 4 * H:5 * H])

    c_old = c_ref[...].astype(jnp.float32)
    ct = f_g * c_old + i_g * g_g
    tanh_ct = jnp.tanh(ct)                 # computed once, reused twice
    ht = o_g * tanh_ct
    st = sen * tanh_ct

    # One lane-dense store of the concatenated (block_b, 3H) output slab.
    out = jnp.concatenate([ht, ct, st], axis=1)
    out_ref[...] = out.astype(out_ref.dtype)


def prepare_fused_params(params, compute_dtype=None):
    """Fold all weights/biases into one (I+H, 5H) matrix + (1, 5H) f32 bias.

    Call ONCE outside the recurrent hot loop (PyTorch-convention shapes in,
    MXU-ready layout out).
    """
    w_ih_t = params["weight_ih"].T          # (I, 4H)
    w_hh_t = params["weight_hh"].T          # (H, 4H)
    wx_t = params["x_gate_w"].T             # (I, H)
    wh_t = params["h_gate_w"].T             # (H, H)

    w_top = jnp.concatenate([w_ih_t, wx_t], axis=1)   # (I, 5H)
    w_bot = jnp.concatenate([w_hh_t, wh_t], axis=1)   # (H, 5H)
    w_fused = jnp.concatenate([w_top, w_bot], axis=0)  # (I+H, 5H)
    if compute_dtype is not None:
        w_fused = w_fused.astype(compute_dtype)

    b_lstm = params["bias_ih"] + params["bias_hh"]     # (4H,)
    b_sen = params["x_gate_b"] + params["h_gate_b"]    # (H,)
    b_fused = jnp.concatenate([b_lstm, b_sen])[None, :].astype(jnp.float32)
    return w_fused, b_fused


def adaptive_lstm_cell(x, h_old, c_old, w_fused, b_fused, *, block_b=None):
    """Fused AdaptiveLSTMCell forward.

    x: (B, I), h_old/c_old: (B, H).
    w_fused/b_fused: from prepare_fused_params().
    Returns (ht, ct, st), each (B, H).
    """
    B, I = x.shape
    H = h_old.shape[1]
    dtype = x.dtype

    # Single fused LHS operand so the kernel issues exactly one jnp.dot.
    xh = jnp.concatenate([x, h_old], axis=1)            # (B, I+H)

    if block_b is None:
        block_b = B if B <= 256 else 256
    grid = (pl.cdiv(B, block_b),)

    # TODO(synk): if this cell is driven inside a time loop, add a time grid
    # axis ("arbitrary") with constant index_maps for the weights so they stay
    # resident in VMEM across all steps.
    out = pl.pallas_call(
        adaptive_lstm_cell_kernel,
        out_shape=jax.ShapeDtypeStruct((B, 3 * H), dtype),
        grid_spec=pltpu.PrefetchScalarGridSpec(
            num_scalar_prefetch=0,
            grid=grid,
            in_specs=[
                pl.BlockSpec((block_b, I + H), lambda b: (b, 0)),   # [x|h]
                pl.BlockSpec((block_b, H), lambda b: (b, 0)),       # c_old
                pl.BlockSpec((I + H, 5 * H), lambda b: (0, 0)),     # weights (resident)
                pl.BlockSpec((1, 5 * H), lambda b: (0, 0)),         # bias (resident)
            ],
            out_specs=pl.BlockSpec((block_b, 3 * H), lambda b: (b, 0)),
        ),
        compiler_params=pltpu.CompilerParams(
            dimension_semantics=("parallel",),   # v7x: shard batch across 2 TCs
        ),
    )(xh, c_old, w_fused, b_fused)

    ht = out[:, 0 * H:1 * H]
    ct = out[:, 1 * H:2 * H]
    st = out[:, 2 * H:3 * H]
    return ht, ct, st


def init_params(key, input_size, hidden_size, dtype=jnp.float32):
    """Deterministic init mimicking PyTorch's uniform(-1/sqrt(H), 1/sqrt(H))."""
    ks = jax.random.split(key, 8)
    bound = 1.0 / math.sqrt(hidden_size)
    u = lambda k, shape: jax.random.uniform(k, shape, dtype, -bound, bound)
    return {
        "weight_ih": u(ks[0], (4 * hidden_size, input_size)),
        "weight_hh": u(ks[1], (4 * hidden_size, hidden_size)),
        "bias_ih":   u(ks[2], (4 * hidden_size,)),
        "bias_hh":   u(ks[3], (4 * hidden_size,)),
        "x_gate_w":  u(ks[4], (hidden_size, input_size)),
        "x_gate_b":  u(ks[5], (hidden_size,)),
        "h_gate_w":  u(ks[6], (hidden_size, hidden_size)),
        "h_gate_b":  u(ks[7], (hidden_size,)),
    }


def reference_forward(x, h_old, c_old, p):
    """Pure-JAX reference replicating torch semantics, for correctness check."""
    gates = x @ p["weight_ih"].T + p["bias_ih"] + h_old @ p["weight_hh"].T + p["bias_hh"]
    H = h_old.shape[1]
    i, f, g, o = (gates[:, k * H:(k + 1) * H] for k in range(4))
    i, f, g, o = jax.nn.sigmoid(i), jax.nn.sigmoid(f), jnp.tanh(g), jax.nn.sigmoid(o)
    ct = f * c_old + i * g
    ht = o * jnp.tanh(ct)
    sen = jax.nn.sigmoid(x @ p["x_gate_w"].T + p["x_gate_b"]
                         + h_old @ p["h_gate_w"].T + p["h_gate_b"])
    st = sen * jnp.tanh(ct)
    return ht, ct, st


if __name__ == "__main__":
    # Sublane-dense batch (multiple of 8) and lane-dense hidden (multiple of 128).
    B, I, H = 8, 64, 128

    key = jax.random.PRNGKey(0)
    k_x, k_h, k_c, k_p = jax.random.split(key, 4)

    x = jax.random.normal(k_x, (B, I), jnp.float32)
    h_old = jax.random.normal(k_h, (B, H), jnp.float32)
    c_old = jax.random.normal(k_c, (B, H), jnp.float32)
    params = init_params(k_p, I, H)

    # One-time fused-parameter prep (hoisted out of any recurrent hot loop).
    w_fused, b_fused = prepare_fused_params(params)

    ht, ct, st = adaptive_lstm_cell(x, h_old, c_old, w_fused, b_fused)
    jax.block_until_ready((ht, ct, st))

    # Correctness check against pure-JAX reference.
    ht_r, ct_r, st_r = reference_forward(x, h_old, c_old, params)
    assert jnp.allclose(ht, ht_r, atol=1e-5), "ht mismatch"
    assert jnp.allclose(ct, ct_r, atol=1e-5), "ct mismatch"
    assert jnp.allclose(st, st_r, atol=1e-5), "st mismatch"

    print("KERNEL_OK")
</pallas_src>

<mosaic_0001>
module attributes {stable_mosaic.version = 11 : i64} {
  func.func @adaptive_lstm_cell_kernel(%arg0: i32, %arg1: memref<8x192xf32, #tpu.memory_space<vmem>>, %arg2: memref<8x128xf32, #tpu.memory_space<vmem>>, %arg3: memref<192x640xf32, #tpu.memory_space<vmem>>, %arg4: memref<1x640xf32, #tpu.memory_space<vmem>>, %arg5: memref<8x384xf32, #tpu.memory_space<vmem>>) attributes {dimension_semantics = [#tpu.dimension_semantics<parallel>], iteration_bounds = array<i64: 1>, scalar_prefetch = 0 : i64, scratch_operands = 0 : i64, tpu.core_type = #tpu.core_type<tc>, window_params = [{transform_indices = @transform_0, window_bounds = array<i64: 8, 192>}, {transform_indices = @transform_1, window_bounds = array<i64: 8, 128>}, {pipeline_mode = #tpu.pipeline_mode<synchronous>, transform_indices = @transform_2, window_bounds = array<i64: 192, 640>}, {pipeline_mode = #tpu.pipeline_mode<synchronous>, transform_indices = @transform_3, window_bounds = array<i64: 1, 640>}, {transform_indices = @transform_4, window_bounds = array<i64: 8, 384>}]} {
    %c0 = arith.constant 0 : index
    %c0_0 = arith.constant 0 : index
    %0 = vector.load %arg1[%c0, %c0_0] : memref<8x192xf32, #tpu.memory_space<vmem>>, vector<8x192xf32>
    %c0_1 = arith.constant 0 : index
    %c0_2 = arith.constant 0 : index
    %1 = vector.load %arg3[%c0_1, %c0_2] : memref<192x640xf32, #tpu.memory_space<vmem>>, vector<192x640xf32>
    %cst = arith.constant dense<0.000000e+00> : vector<8x640xf32>
    %2 = tpu.matmul %0, %1, %cst {dimension_numbers = #tpu.dot_dimension_numbers<[1], [0], [0], [1], [0, 0, 1, 1], [], []>} : vector<8x192xf32>, vector<192x640xf32>, vector<8x640xf32> -> vector<8x640xf32>
    %c0_3 = arith.constant 0 : index
    %c0_4 = arith.constant 0 : index
    %3 = vector.load %arg4[%c0_3, %c0_4] : memref<1x640xf32, #tpu.memory_space<vmem>>, vector<1x640xf32>
    %4 = vector.broadcast %3 : vector<1x640xf32> to vector<8x640xf32>
    %5 = arith.addf %2, %4 : vector<8x640xf32>
    %6 = vector.extract_strided_slice %5 {offsets = [0, 0], sizes = [8, 128], strides = [1, 1]} : vector<8x640xf32> to vector<8x128xf32>
    %7 = arith.negf %6 : vector<8x128xf32>
    %8 = math.exp %7 : vector<8x128xf32>
    %cst_5 = arith.constant 1.000000e+00 : f32
    %9 = vector.broadcast %cst_5 : f32 to vector<8x128xf32>
    %10 = arith.addf %9, %8 : vector<8x128xf32>
    %11 = arith.divf %9, %10 : vector<8x128xf32>
    %12 = vector.extract_strided_slice %5 {offsets = [0, 128], sizes = [8, 128], strides = [1, 1]} : vector<8x640xf32> to vector<8x128xf32>
    %13 = arith.negf %12 : vector<8x128xf32>
    %14 = math.exp %13 : vector<8x128xf32>
    %cst_6 = arith.constant 1.000000e+00 : f32
    %15 = vector.broadcast %cst_6 : f32 to vector<8x128xf32>
    %16 = arith.addf %15, %14 : vector<8x128xf32>
    %17 = arith.divf %15, %16 : vector<8x128xf32>
    %18 = vector.extract_strided_slice %5 {offsets = [0, 256], sizes = [8, 128], strides = [1, 1]} : vector<8x640xf32> to vector<8x128xf32>
    %19 = math.tanh %18 : vector<8x128xf32>
    %20 = vector.extract_strided_slice %5 {offsets = [0, 384], sizes = [8, 128], strides = [1, 1]} : vector<8x640xf32> to vector<8x128xf32>
    %21 = arith.negf %20 : vector<8x128xf32>
    %22 = math.exp %21 : vector<8x128xf32>
    %cst_7 = arith.constant 1.000000e+00 : f32
    %23 = vector.broadcast %cst_7 : f32 to vector<8x128xf32>
    %24 = arith.addf %23, %22 : vector<8x128xf32>
    %25 = arith.divf %23, %24 : vector<8x128xf32>
    %26 = vector.extract_strided_slice %5 {offsets = [0, 512], sizes = [8, 128], strides = [1, 1]} : vector<8x640xf32> to vector<8x128xf32>
    %27 = arith.negf %26 : vector<8x128xf32>
    %28 = math.exp %27 : vector<8x128xf32>
    %cst_8 = arith.constant 1.000000e+00 : f32
    %29 = vector.broadcast %cst_8 : f32 to vector<8x128xf32>
    %30 = arith.addf %29, %28 : vector<8x128xf32>
    %31 = arith.divf %29, %30 : vector<8x128xf32>
    %c0_9 = arith.constant 0 : index
    %c0_10 = arith.constant 0 : index
    %32 = vector.load %arg2[%c0_9, %c0_10] : memref<8x128xf32, #tpu.memory_space<vmem>>, vector<8x128xf32>
    %33 = arith.mulf %17, %32 : vector<8x128xf32>
    %34 = arith.mulf %11, %19 : vector<8x128xf32>
    %35 = arith.addf %33, %34 : vector<8x128xf32>
    %36 = math.tanh %35 : vector<8x128xf32>
    %37 = arith.mulf %25, %36 : vector<8x128xf32>
    %38 = arith.mulf %31, %36 : vector<8x128xf32>
    %39 = tpu.concatenate %37, %35, %38 in 1 : vector<8x128xf32>, vector<8x128xf32>, vector<8x128xf32> -> vector<8x384xf32>
    %c0_11 = arith.constant 0 : index
    %c0_12 = arith.constant 0 : index
    %40 = vector.load %arg5[%c0_11, %c0_12] : memref<8x384xf32, #tpu.memory_space<vmem>>, vector<8x384xf32>
    tpu.vector_store %arg5[%c0_11, %c0_12], %39 {strides = array<i32>} : memref<8x384xf32, #tpu.memory_space<vmem>>, vector<8x384xf32>,
    return
  }
  func.func @transform_0(%arg0: i32) -> (i32, i32) {
    %c0_i32 = arith.constant 0 : i32
    %c0_i32_0 = arith.constant 0 : i32
    return %arg0, %c0_i32 : i32, i32
  }
  func.func @transform_1(%arg0: i32) -> (i32, i32) {
    %c0_i32 = arith.constant 0 : i32
    %c0_i32_0 = arith.constant 0 : i32
    return %arg0, %c0_i32 : i32, i32
  }
  func.func @transform_2(%arg0: i32) -> (i32, i32) {
    %c0_i32 = arith.constant 0 : i32
    %c0_i32_0 = arith.constant 0 : i32
    %c0_i32_1 = arith.constant 0 : i32
    return %c0_i32, %c0_i32_0 : i32, i32
  }
  func.func @transform_3(%arg0: i32) -> (i32, i32) {
    %c0_i32 = arith.constant 0 : i32
    %c0_i32_0 = arith.constant 0 : i32
    %c0_i32_1 = arith.constant 0 : i32
    return %c0_i32, %c0_i32_0 : i32, i32
  }
  func.func @transform_4(%arg0: i32) -> (i32, i32) {
    %c0_i32 = arith.constant 0 : i32
    %c0_i32_0 = arith.constant 0 : i32
    return %arg0, %c0_i32 : i32, i32
  }
}

</mosaic_0001>

<llo_original>
// kernel: tpu_custom_call.1
$region0: #{tpu_custom_call.1}
  #allocation0 [shape = 'u32[]', space=smem, size = 0x4, offset = 0x4, fixed_abs, tag = 'smem constant byte address 0x4 - core index']
  #allocation1 [shape = 'u32[144,128]{1,0:T(1,128)}', space=vmem, size = 0x12000, scoped, tag = 'internal scratch']
  %s0 = inlined_call_operand.hbm [shape: f32[8,192], index: 0, kind: input, shape index: {}]
  %s1 = inlined_call_operand.hbm [shape: f32[8,128], index: 1, kind: input, shape index: {}]
  %s2 = inlined_call_operand.hbm [shape: f32[192,640], index: 2, kind: input, shape index: {}]
  %s3 = inlined_call_operand.vmem [shape: f32[1,640], index: 3, kind: input, shape index: {}]
  %s4 = inlined_call_operand.hbm [shape: f32[8,384], index: 4, kind: output, shape index: {}]
  %s5 = sld [smem:[#allocation0]]
  $region38: #{tpu_custom_call.1} parent=0
    _
  %s7 = ssub.s32 1, %s5
  %s8 = scalar_select 0, %s7, %s5
  $region1: #{tpu_custom_call.1} parent=0
    #allocation2 [shape = 'u8[8192]{0}', space=vmem, size = 0x2000, scoped, tag = 'input window, operand 0, single buffered']
    #allocation3 [shape = 's32[1]{0}', space=sflag, size = 0x4, scoped, tag = 'scoped memory for tpu_custom_call.1']
    #allocation4 [shape = 's32[1]{0}', space=sflag, size = 0x4, scoped, tag = 'scoped memory for tpu_custom_call.1']
    #allocation5 [shape = 'u8[4096]{0}', space=vmem, size = 0x1000, scoped, tag = 'input window, operand 1, single buffered']
    #allocation6 [shape = 's32[1]{0}', space=sflag, size = 0x4, scoped, tag = 'scoped memory for tpu_custom_call.1']
    #allocation7 [shape = 'u8[491520]{0}', space=vmem, size = 0x78000, scoped, tag = 'input window, operand 2, single buffered']
    #allocation8 [shape = 'u8[12288]{0}', space=vmem, size = 0x3000, scoped, tag = 'output window, operand 0, single buffered']
    %9 = vsyncpa [#allocation3], 0
    %10 = vsyncpa [#allocation6], 0
    %11 = vsyncpa [#allocation4], 0
    // Predicated region
    $region2: #{tpu_custom_call.1} parent=1 // pred_check
      _
    $region3: #{tpu_custom_call.1} parent=1 // pred_check_branch
      %13 = sbr.rel (0) target = $region5
    $region4: #{tpu_custom_call.1} parent=1 // pred_region
      %s15 = ssub.s32 256, 256
      %16 = vsyncadd [#allocation3], %s15
      %s18 = sshll.u32 [#allocation2], 4
      %s19 = int_to_ptr.vmem [resolvable:$true] %s18
      %21 = dma.hbm_to_vmem [thread:$0]  %s0, 256, %s19, [#allocation3]
    $region5: #{tpu_custom_call.1} parent=1 // pred_fallthru
      _
    // Predicated region
    $region6: #{tpu_custom_call.1} parent=1 // pred_check
      _
    $region7: #{tpu_custom_call.1} parent=1 // pred_check_branch
      %23 = sbr.rel (0) target = $region9
    $region8: #{tpu_custom_call.1} parent=1 // pred_region
      %s25 = ssub.s32 128, 128
      %26 = vsyncadd [#allocation6], %s25
      %s28 = sshll.u32 [#allocation5], 4
      %s29 = int_to_ptr.vmem [resolvable:$true] %s28
      %31 = dma.hbm_to_vmem [thread:$0]  %s1, 128, %s29, [#allocation6]
    $region9: #{tpu_custom_call.1} parent=1 // pred_fallthru
      _
    // Predicated region
    $region10: #{tpu_custom_call.1} parent=1 // pred_check
      _
    $region11: #{tpu_custom_call.1} parent=1 // pred_check_branch
      %33 = sbr.rel (0) target = $region13
    $region12: #{tpu_custom_call.1} parent=1 // pred_region
      %s35 = ssub.s32 15360, 15360
      %36 = vsyncadd [#allocation6], %s35
      %s37 = sshll.u32 [#allocation7], 4
      %s38 = int_to_ptr.vmem [resolvable:$true] %s37
      %43 = dma.hbm_to_vmem [thread:$0]  %s2, 15360, %s38, [#allocation6], 640, 640, 40
    $region13: #{tpu_custom_call.1} parent=1 // pred_fallthru
      _
    // Predicated region
    $region14: #{tpu_custom_call.1} parent=1 // pred_check
      _
    $region15: #{tpu_custom_call.1} parent=1 // pred_check_branch
      %45 = sbr.rel (0) target = $region17
    $region16: #{tpu_custom_call.1} parent=1 // pred_region
      _
    $region17: #{tpu_custom_call.1} parent=1 // pred_fallthru
      _
    // Predicated region
    $region18: #{tpu_custom_call.1} parent=1 // pred_check
      _
    $region19: #{tpu_custom_call.1} parent=1 // pred_check_branch
      %47 = sbr.rel (0) target = $region21
    $region20: #{tpu_custom_call.1} parent=1 // pred_region
      %48 = dma.done [#allocation3], 256
    $region21: #{tpu_custom_call.1} parent=1 // pred_fallthru
      _
    // Predicated region
    $region22: #{tpu_custom_call.1} parent=1 // pred_check
      _
    $region23: #{tpu_custom_call.1} parent=1 // pred_check_branch
      %50 = sbr.rel (0) target = $region25
    $region24: #{tpu_custom_call.1} parent=1 // pred_region
      %51 = dma.done [#allocation6], 128
    $region25: #{tpu_custom_call.1} parent=1 // pred_fallthru
      _
    // Predicated region
    $region26: #{tpu_custom_call.1} parent=1 // pred_check
      _
    $region27: #{tpu_custom_call.1} parent=1 // pred_check_branch
      %53 = sbr.rel (0) target = $region29
    $region28: #{tpu_custom_call.1} parent=1 // pred_region
      %54 = dma.done [#allocation6], 15360
    $region29: #{tpu_custom_call.1} parent=1 // pred_fallthru
      _
    %v55 = vld [vmem:[#allocation2] sm:$0xff]
    %v56 = vld [vmem:[#allocation2 + $0x8] sm:$0xff]
    %v57 = vld [vmem:[#allocation7] sm:$0xff]
    %v58 = vld [vmem:[#allocation7 + $0x8] sm:$0xff]
    %v59 = vld [vmem:[#allocation7 + $0x10] sm:$0xff]
    %v60 = vld [vmem:[#allocation7 + $0x18] sm:$0xff]
    %v61 = vld [vmem:[#allocation7 + $0x20] sm:$0xff]
    %v62 = vld [vmem:[#allocation7 + $0x28] sm:$0xff]
    %v63 = vld [vmem:[#allocation7 + $0x30] sm:$0xff]
    %v64 = vld [vmem:[#allocation7 + $0x38] sm:$0xff]
    %v65 = vld [vmem:[#allocation7 + $0x40] sm:$0xff]
    %v66 = vld [vmem:[#allocation7 + $0x48] sm:$0xff]
    %v67 = vld [vmem:[#allocation7 + $0x50] sm:$0xff]
    %v68 = vld [vmem:[#allocation7 + $0x58] sm:$0xff]
    %v69 = vld [vmem:[#allocation7 + $0x60] sm:$0xff]
    %v70 = vld [vmem:[#allocation7 + $0x68] sm:$0xff]
    %v71 = vld [vmem:[#allocation7 + $0x70] sm:$0xff]
    %v72 = vld [vmem:[#allocation7 + $0x78] sm:$0xff]
    %v73 = vld [vmem:[#allocation7 + $0x80] sm:$0xff]
    %v74 = vld [vmem:[#allocation7 + $0x88] sm:$0xff]
    %v75 = vld [vmem:[#allocation7 + $0x90] sm:$0xff]
    %v76 = vld [vmem:[#allocation7 + $0x98] sm:$0xff]
    %v77 = vld [vmem:[#allocation7 + $0xa0] sm:$0xff]
    %v78 = vld [vmem:[#allocation7 + $0xa8] sm:$0xff]
    %v79 = vld [vmem:[#allocation7 + $0xb0] sm:$0xff]
    %v80 = vld [vmem:[#allocation7 + $0xb8] sm:$0xff]
    %v81 = vld [vmem:[#allocation7 + $0xc0] sm:$0xff]
    %v82 = vld [vmem:[#allocation7 + $0xc8] sm:$0xff]
    %v83 = vld [vmem:[#allocation7 + $0xd0] sm:$0xff]
    %v84 = vld [vmem:[#allocation7 + $0xd8] sm:$0xff]
    %v85 = vld [vmem:[#allocation7 + $0xe0] sm:$0xff]
    %v86 = vld [vmem:[#allocation7 + $0xe8] sm:$0xff]
    %v87 = vld [vmem:[#allocation7 + $0xf0] sm:$0xff]
    %v88 = vld [vmem:[#allocation7 + $0xf8] sm:$0xff]
    %v89 = vld [vmem:[#allocation7 + $0x100] sm:$0xff]
    %v90 = vld [vmem:[#allocation7 + $0x108] sm:$0xff]
    %v91 = vld [vmem:[#allocation7 + $0x110] sm:$0xff]
    %v92 = vld [vmem:[#allocation7 + $0x118] sm:$0xff]
    %v93 = vld [vmem:[#allocation7 + $0x120] sm:$0xff]
    %v94 = vld [vmem:[#allocation7 + $0x128] sm:$0xff]
    %v95 = vld [vmem:[#allocation7 + $0x130] sm:$0xff]
    %v96 = vld [vmem:[#allocation7 + $0x138] sm:$0xff]
    %v97 = vld [vmem:[#allocation7 + $0x140] sm:$0xff]
    %v98 = vld [vmem:[#allocation7 + $0x148] sm:$0xff]
    %v99 = vld [vmem:[#allocation7 + $0x150] sm:$0xff]
    %v100 = vld [vmem:[#allocation7 + $0x158] sm:$0xff]
    %v101 = vld [vmem:[#allocation7 + $0x160] sm:$0xff]
    %v102 = vld [vmem:[#allocation7 + $0x168] sm:$0xff]
    %v103 = vld [vmem:[#allocation7 + $0x170] sm:$0xff]
    %v104 = vld [vmem:[#allocation7 + $0x178] sm:$0xff]
    %v105 = vld [vmem:[#allocation7 + $0x180] sm:$0xff]
    %v106 = vld [vmem:[#allocation7 + $0x188] sm:$0xff]
    %v107 = vld [vmem:[#allocation7 + $0x190] sm:$0xff]
    %v108 = vld [vmem:[#allocation7 + $0x198] sm:$0xff]
    %v109 = vld [vmem:[#allocation7 + $0x1a0] sm:$0xff]
    %v110 = vld [vmem:[#allocation7 + $0x1a8] sm:$0xff]
    %v111 = vld [vmem:[#allocation7 + $0x1b0] sm:$0xff]
    %v112 = vld [vmem:[#allocation7 + $0x1b8] sm:$0xff]
    %v113 = vld [vmem:[#allocation7 + $0x1c0] sm:$0xff]
    %v114 = vld [vmem:[#allocation7 + $0x1c8] sm:$0xff]
    %v115 = vld [vmem:[#allocation7 + $0x1d0] sm:$0xff]
    %v116 = vld [vmem:[#allocation7 + $0x1d8] sm:$0xff]
    %v117 = vld [vmem:[#allocation7 + $0x1e0] sm:$0xff]
    %v118 = vld [vmem:[#allocation7 + $0x1e8] sm:$0xff]
    %v119 = vld [vmem:[#allocation7 + $0x1f0] sm:$0xff]
    %v120 = vld [vmem:[#allocation7 + $0x1f8] sm:$0xff]
    %v121 = vld [vmem:[#allocation7 + $0x200] sm:$0xff]
    %v122 = vld [vmem:[#allocation7 + $0x208] sm:$0xff]
    %v123 = vld [vmem:[#allocation7 + $0x210] sm:$0xff]
    %v124 = vld [vmem:[#allocation7 + $0x218] sm:$0xff]
    %v125 = vld [vmem:[#allocation7 + $0x220] sm:$0xff]
    %v126 = vld [vmem:[#allocation7 + $0x228] sm:$0xff]
    %v127 = vld [vmem:[#allocation7 + $0x230] sm:$0xff]
    %v128 = vld [vmem:[#allocation7 + $0x238] sm:$0xff]
    %v129 = vld [vmem:[#allocation7 + $0x240] sm:$0xff]
    %v130 = vld [vmem:[#allocation7 + $0x248] sm:$0xff]
    %v131 = vld [vmem:[#allocation7 + $0x250] sm:$0xff]
    %v132 = vld [vmem:[#allocation7 + $0x258] sm:$0xff]
    %v133 = vld [vmem:[#allocation7 + $0x260] sm:$0xff]
    %v134 = vld [vmem:[#allocation7 + $0x268] sm:$0xff]
    %v135 = vld [vmem:[#allocation7 + $0x270] sm:$0xff]
    %v136 = vld [vmem:[#allocation7 + $0x278] sm:$0xff]
    %v137 = vld [vmem:[#allocation7 + $0x280] sm:$0xff]
    %v138 = vld [vmem:[#allocation7 + $0x288] sm:$0xff]
    %v139 = vld [vmem:[#allocation7 + $0x290] sm:$0xff]
    %v140 = vld [vmem:[#allocation7 + $0x298] sm:$0xff]
    %v141 = vld [vmem:[#allocation7 + $0x2a0] sm:$0xff]
    %v142 = vld [vmem:[#allocation7 + $0x2a8] sm:$0xff]
    %v143 = vld [vmem:[#allocation7 + $0x2b0] sm:$0xff]
    %v144 = vld [vmem:[#allocation7 + $0x2b8] sm:$0xff]
    %v145 = vld [vmem:[#allocation7 + $0x2c0] sm:$0xff]
    %v146 = vld [vmem:[#allocation7 + $0x2c8] sm:$0xff]
    %v147 = vld [vmem:[#allocation7 + $0x2d0] sm:$0xff]
    %v148 = vld [vmem:[#allocation7 + $0x2d8] sm:$0xff]
    %v149 = vld [vmem:[#allocation7 + $0x2e0] sm:$0xff]
    %v150 = vld [vmem:[#allocation7 + $0x2e8] sm:$0xff]
    %v151 = vld [vmem:[#allocation7 + $0x2f0] sm:$0xff]
    %v152 = vld [vmem:[#allocation7 + $0x2f8] sm:$0xff]
    %v153 = vld [vmem:[#allocation7 + $0x300] sm:$0xff]
    %v154 = vld [vmem:[#allocation7 + $0x308] sm:$0xff]
    %v155 = vld [vmem:[#allocation7 + $0x310] sm:$0xff]
    %v156 = vld [vmem:[#allocation7 + $0x318] sm:$0xff]
    %v157 = vld [vmem:[#allocation7 + $0x320] sm:$0xff]
    %v158 = vld [vmem:[#allocation7 + $0x328] sm:$0xff]
    %v159 = vld [vmem:[#allocation7 + $0x330] sm:$0xff]
    %v160 = vld [vmem:[#allocation7 + $0x338] sm:$0xff]
    %v161 = vld [vmem:[#allocation7 + $0x340] sm:$0xff]
    %v162 = vld [vmem:[#allocation7 + $0x348] sm:$0xff]
    %v163 = vld [vmem:[#allocation7 + $0x350] sm:$0xff]
    %v164 = vld [vmem:[#allocation7 + $0x358] sm:$0xff]
    %v165 = vld [vmem:[#allocation7 + $0x360] sm:$0xff]
    %v166 = vld [vmem:[#allocation7 + $0x368] sm:$0xff]
    %v167 = vld [vmem:[#allocation7 + $0x370] sm:$0xff]
    %v168 = vld [vmem:[#allocation7 + $0x378] sm:$0xff]
    %v169 = vld [vmem:[#allocation7 + $0x380] sm:$0xff]
    %v170 = vld [vmem:[#allocation7 + $0x388] sm:$0xff]
    %v171 = vld [vmem:[#allocation7 + $0x390] sm:$0xff]
    %v172 = vld [vmem:[#allocation7 + $0x398] sm:$0xff]
    %v173 = vld [vmem:[#allocation7 + $0x3a0] sm:$0xff]
    %v174 = vld [vmem:[#allocation7 + $0x3a8] sm:$0xff]
    %v175 = vld [vmem:[#allocation7 + $0x3b0] sm:$0xff]
    %v176 = vld [vmem:[#allocation7 + $0x3b8] sm:$0xff]
    %v177 = vld [vmem:[%s3] sm:$0x1f]
    %v179 = vlaneseq
    %v180 = vshrl.u32 %v179, 7
    %v181 = vsub.s32 0, %v180
    %v182 = vrot.slane %v177, %v181
    %v183 = vlaneseq
    %v184 = vshrl.u32 %v183, 7
    %v185 = vsub.s32 1, %v184
    %v186 = vrot.slane %v177, %v185
    %v187 = vlaneseq
    %v188 = vshrl.u32 %v187, 7
    %v189 = vsub.s32 2, %v188
    %v190 = vrot.slane %v177, %v189
    %v191 = vlaneseq
    %v192 = vshrl.u32 %v191, 7
    %v193 = vsub.s32 3, %v192
    %v194 = vrot.slane %v177, %v193
    %v195 = vlaneseq
    %v196 = vshrl.u32 %v195, 7
    %v197 = vsub.s32 4, %v196
    %v198 = vrot.slane %v177, %v197
    %vm204 = vcmask 523264
    %v206 = vsel %vm204, %v56, 0
    %208 = vmatprep.subr.mxu0 %v58
    %209 = vmatpush1.msra.mxu0 %v57
    %210 = vmatprep.subr.mxu0 %v63
    %211 = vmatpush1.msra.mxu0 %v62
    %212 = vmatprep.subr.mxu0 %v68
    %213 = vmatpush1.msra.mxu0 %v67
    %214 = vmatprep.subr.mxu0 %v73
    %215 = vmatpush1.msra.mxu0 %v72
    %216 = vmatprep.subr.mxu0 %v78
    %217 = vmatpush1.msra.mxu0 %v77
    %218 = vmatprep.subr.mxu0 %v83
    %219 = vmatpush1.msra.mxu0 %v82
    %220 = vmatprep.subr.mxu0 %v88
    %221 = vmatpush1.msra.mxu0 %v87
    %222 = vmatprep.subr.mxu0 %v93
    %223 = vmatpush1.msra.mxu0 %v92
    %224 = vmatprep.subr.mxu0 %v98
    %225 = vmatpush1.msra.mxu0 %v97
    %226 = vmatprep.subr.mxu0 %v103
    %227 = vmatpush1.msra.mxu0 %v102
    %228 = vmatprep.subr.mxu0 %v108
    %229 = vmatpush1.msra.mxu0 %v107
    %230 = vmatprep.subr.mxu0 %v113
    %231 = vmatpush1.msra.mxu0 %v112
    %232 = vmatprep.subr.mxu0 %v118
    %233 = vmatpush1.msra.mxu0 %v117
    %234 = vmatprep.subr.mxu0 %v123
    %235 = vmatpush1.msra.mxu0 %v122
    %236 = vmatprep.subr.mxu0 %v128
    %237 = vmatpush1.msra.mxu0 %v127
    %238 = vmatprep.subr.mxu0 %v133
    %239 = vmatpush1.msra.mxu0 %v132
    %240 = vmatprep.subr.mxu0 %v138
    %241 = vmatpush1.msra.mxu0 %v137
    %242 = vmatprep.subr.mxu0 %v143
    %243 = vmatpush1.msra.mxu0 %v142
    %244 = vmatprep.subr.mxu0 %v148
    %245 = vmatpush1.msra.mxu0 %v147
    %246 = vmatprep.subr.mxu0 %v153
    %247 = vmatpush1.msra.mxu0 %v152
    %248 = vmatprep.subr.mxu0 %v158
    %249 = vmatpush1.msra.mxu0 %v157
    %250 = vmatprep.subr.mxu0 %v163
    %251 = vmatpush1.msra.mxu0 %v162
    %252 = vmatprep.subr.mxu0 %v168
    %253 = vmatpush1.msra.mxu0 %v167
    %254 = vmatprep.subr.mxu0 %v173
    %255 = vmatpush1.msra.mxu0 %v172
    %256 = vmatprep.subr.mxu0 0.0
    %257 = vmatpush1.msra.mxu0 0.0
    %258 = vmatprep.subr.mxu0 0.0
    %259 = vmatpush1.msra.mxu0 0.0
    %260 = vmatprep.subr.mxu0 0.0
    %261 = vmatpush1.msra.mxu0 0.0
    %262 = vmatprep.subr.mxu0 0.0
    %263 = vmatpush1.msra.mxu0 0.0
    %264 = vmatprep.subr.mxu0 0.0
    %265 = vmatpush1.msra.mxu0 0.0
    %266 = vmatprep.subr.mxu0 0.0
    %267 = vmatpush1.msra.mxu0 0.0
    %268 = vmatprep.subr.mxu0 0.0
    %269 = vmatpush1.msra.mxu0 0.0
    %270 = vmatprep.subr.mxu0 0.0
    %271 = vmatpush1.msra.mxu0 0.0
    %272 = vmatprep.mubr.f32.mxu0 %v206
    %273 = vmatmul.mubr.f32.gmra.mrb[0].mxu0 %v55
    %v274 = vpop.f32.mrb[0].mxu0
    %v275 = vadd.f32 %v182, %v274
    %v276 = vpop.f32.mrb[0].mxu0
    %v277 = vadd.f32 %v186, %v276
    %278 = vdwg.mxu0
    %279 = vmatprep.subr.mxu0 %v60
    %280 = vmatpush1.msra.mxu0 %v59
    %281 = vmatprep.subr.mxu0 %v65
    %282 = vmatpush1.msra.mxu0 %v64
    %283 = vmatprep.subr.mxu0 %v70
    %284 = vmatpush1.msra.mxu0 %v69
    %285 = vmatprep.subr.mxu0 %v75
    %286 = vmatpush1.msra.mxu0 %v74
    %287 = vmatprep.subr.mxu0 %v80
    %288 = vmatpush1.msra.mxu0 %v79
    %289 = vmatprep.subr.mxu0 %v85
    %290 = vmatpush1.msra.mxu0 %v84
    %291 = vmatprep.subr.mxu0 %v90
    %292 = vmatpush1.msra.mxu0 %v89
    %293 = vmatprep.subr.mxu0 %v95
    %294 = vmatpush1.msra.mxu0 %v94
    %295 = vmatprep.subr.mxu0 %v100
    %296 = vmatpush1.msra.mxu0 %v99
    %297 = vmatprep.subr.mxu0 %v105
    %298 = vmatpush1.msra.mxu0 %v104
    %299 = vmatprep.subr.mxu0 %v110
    %300 = vmatpush1.msra.mxu0 %v109
    %301 = vmatprep.subr.mxu0 %v115
    %302 = vmatpush1.msra.mxu0 %v114
    %303 = vmatprep.subr.mxu0 %v120
    %304 = vmatpush1.msra.mxu0 %v119
    %305 = vmatprep.subr.mxu0 %v125
    %306 = vmatpush1.msra.mxu0 %v124
    %307 = vmatprep.subr.mxu0 %v130
    %308 = vmatpush1.msra.mxu0 %v129
    %309 = vmatprep.subr.mxu0 %v135
    %310 = vmatpush1.msra.mxu0 %v134
    %311 = vmatprep.subr.mxu0 %v140
    %312 = vmatpush1.msra.mxu0 %v139
    %313 = vmatprep.subr.mxu0 %v145
    %314 = vmatpush1.msra.mxu0 %v144
    %315 = vmatprep.subr.mxu0 %v150
    %316 = vmatpush1.msra.mxu0 %v149
    %317 = vmatprep.subr.mxu0 %v155
    %318 = vmatpush1.msra.mxu0 %v154
    %319 = vmatprep.subr.mxu0 %v160
    %320 = vmatpush1.msra.mxu0 %v159
    %321 = vmatprep.subr.mxu0 %v165
    %322 = vmatpush1.msra.mxu0 %v164
    %323 = vmatprep.subr.mxu0 %v170
    %324 = vmatpush1.msra.mxu0 %v169
    %325 = vmatprep.subr.mxu0 %v175
    %326 = vmatpush1.msra.mxu0 %v174
    %327 = vmatprep.subr.mxu0 0.0
    %328 = vmatpush1.msra.mxu0 0.0
    %329 = vmatprep.subr.mxu0 0.0
    %330 = vmatpush1.msra.mxu0 0.0
    %331 = vmatprep.subr.mxu0 0.0
    %332 = vmatpush1.msra.mxu0 0.0
    %333 = vmatprep.subr.mxu0 0.0
    %334 = vmatpush1.msra.mxu0 0.0
    %335 = vmatprep.subr.mxu0 0.0
    %336 = vmatpush1.msra.mxu0 0.0
    %337 = vmatprep.subr.mxu0 0.0
    %338 = vmatpush1.msra.mxu0 0.0
    %339 = vmatprep.subr.mxu0 0.0
    %340 = vmatpush1.msra.mxu0 0.0
    %341 = vmatprep.subr.mxu0 0.0
    %342 = vmatpush1.msra.mxu0 0.0
    %343 = vmatprep.mubr.f32.mxu0 %v206
    %344 = vmatmul.mubr.f32.gmra.mrb[0].mxu0 %v55
    %v345 = vpop.f32.mrb[0].mxu0
    %v346 = vadd.f32 %v190, %v345
    %v347 = vpop.f32.mrb[0].mxu0
    %v348 = vadd.f32 %v194, %v347
    %349 = vdwg.mxu0
    %350 = vmatprep.subr.mxu0 0.0
    %351 = vmatpush1.msra.mxu0 %v61
    %352 = vmatprep.subr.mxu0 0.0
    %353 = vmatpush1.msra.mxu0 %v66
    %354 = vmatprep.subr.mxu0 0.0
    %355 = vmatpush1.msra.mxu0 %v71
    %356 = vmatprep.subr.mxu0 0.0
    %357 = vmatpush1.msra.mxu0 %v76
    %358 = vmatprep.subr.mxu0 0.0
    %359 = vmatpush1.msra.mxu0 %v81
    %360 = vmatprep.subr.mxu0 0.0
    %361 = vmatpush1.msra.mxu0 %v86
    %362 = vmatprep.subr.mxu0 0.0
    %363 = vmatpush1.msra.mxu0 %v91
    %364 = vmatprep.subr.mxu0 0.0
    %365 = vmatpush1.msra.mxu0 %v96
    %366 = vmatprep.subr.mxu0 0.0
    %367 = vmatpush1.msra.mxu0 %v101
    %368 = vmatprep.subr.mxu0 0.0
    %369 = vmatpush1.msra.mxu0 %v106
    %370 = vmatprep.subr.mxu0 0.0
    %371 = vmatpush1.msra.mxu0 %v111
    %372 = vmatprep.subr.mxu0 0.0
    %373 = vmatpush1.msra.mxu0 %v116
    %374 = vmatprep.subr.mxu0 0.0
    %375 = vmatpush1.msra.mxu0 %v121
    %376 = vmatprep.subr.mxu0 0.0
    %377 = vmatpush1.msra.mxu0 %v126
    %378 = vmatprep.subr.mxu0 0.0
    %379 = vmatpush1.msra.mxu0 %v131
    %380 = vmatprep.subr.mxu0 0.0
    %381 = vmatpush1.msra.mxu0 %v136
    %382 = vmatprep.subr.mxu0 0.0
    %383 = vmatpush1.msra.mxu0 %v141
    %384 = vmatprep.subr.mxu0 0.0
    %385 = vmatpush1.msra.mxu0 %v146
    %386 = vmatprep.subr.mxu0 0.0
    %387 = vmatpush1.msra.mxu0 %v151
    %388 = vmatprep.subr.mxu0 0.0
    %389 = vmatpush1.msra.mxu0 %v156
    %390 = vmatprep.subr.mxu0 0.0
    %391 = vmatpush1.msra.mxu0 %v161
    %392 = vmatprep.subr.mxu0 0.0
    %393 = vmatpush1.msra.mxu0 %v166
    %394 = vmatprep.subr.mxu0 0.0
    %395 = vmatpush1.msra.mxu0 %v171
    %396 = vmatprep.subr.mxu0 0.0
    %397 = vmatpush1.msra.mxu0 %v176
    %398 = vmatprep.subr.mxu0 0.0
    %399 = vmatpush1.msra.mxu0 0.0
    %400 = vmatprep.subr.mxu0 0.0
    %401 = vmatpush1.msra.mxu0 0.0
    %402 = vmatprep.subr.mxu0 0.0
    %403 = vmatpush1.msra.mxu0 0.0
    %404 = vmatprep.subr.mxu0 0.0
    %405 = vmatpush1.msra.mxu0 0.0
    %406 = vmatprep.subr.mxu0 0.0
    %407 = vmatpush1.msra.mxu0 0.0
    %408 = vmatprep.subr.mxu0 0.0
    %409 = vmatpush1.msra.mxu0 0.0
    %410 = vmatprep.subr.mxu0 0.0
    %411 = vmatpush1.msra.mxu0 0.0
    %412 = vmatprep.subr.mxu0 0.0
    %413 = vmatpush1.msra.mxu0 0.0
    %414 = vmatprep.mubr.f32.mxu0 %v206
    %415 = vmatmul.mubr.f32.gmra.mrb[0].mxu0 %v55
    %v416 = vpop.f32.mrb[0].mxu0
    %v417 = vadd.f32 %v198, %v416
    %v418 = vpop.f32.mrb[0].mxu0
    %419 = vdwg.mxu0
    %v420 = vxor.u32 %v275, 2147483648
    %v421 = vmul.f32 %v420, 1.442695
    %v422 = vpow.pop %v421
    %v423 = vadd.f32 %v422, 1.0
    %v424 = vrcp.pop %v423
    %v425 = vmul.f32 1.0, %v424
    %v426 = vxor.u32 %v277, 2147483648
    %v427 = vmul.f32 %v426, 1.442695
    %v428 = vpow.pop %v427
    %v429 = vadd.f32 %v428, 1.0
    %v430 = vrcp.pop %v429
    %v431 = vmul.f32 1.0, %v430
    %v432 = vtanh.pop %v346
    %v433 = vxor.u32 %v348, 2147483648
    %v434 = vmul.f32 %v433, 1.442695
    %v435 = vpow.pop %v434
    %v436 = vadd.f32 %v435, 1.0
    %v437 = vrcp.pop %v436
    %v438 = vmul.f32 1.0, %v437
    %v439 = vxor.u32 %v417, 2147483648
    %v440 = vmul.f32 %v439, 1.442695
    %v441 = vpow.pop %v440
    %v442 = vadd.f32 %v441, 1.0
    %v443 = vrcp.pop %v442
    %v444 = vmul.f32 1.0, %v443
    %v445 = vld [vmem:[#allocation5] sm:$0xff]
    %v446 = vmul.f32 %v431, %v445
    %v447 = vmul.f32 %v425, %v432
    %v448 = vadd.f32 %v446, %v447
    %v449 = vtanh.pop %v448
    %v450 = vmul.f32 %v438, %v449
    %v451 = vmul.f32 %v444, %v449
    %452 = vst [vmem:[#allocation8] sm:$0xff] %v450
    %453 = vst [vmem:[#allocation8 + $0x8] sm:$0xff] %v448
    %454 = vst [vmem:[#allocation8 + $0x10] sm:$0xff] %v451
    // Predicated region
    $region30: #{tpu_custom_call.1} parent=1 // pred_check
      _
    $region31: #{tpu_custom_call.1} parent=1 // pred_check_branch
      %456 = sbr.rel (0) target = $region33
    $region32: #{tpu_custom_call.1} parent=1 // pred_region
      %s458 = ssub.s32 384, 384
      %459 = vsyncadd [#allocation4], %s458
      %s461 = sshll.u32 [#allocation8], 4
      %s462 = int_to_ptr.vmem [resolvable:$true] %s461
      %464 = dma.vmem_to_hbm [thread:$0]  %s462, 384, %s4, [#allocation4]
    $region33: #{tpu_custom_call.1} parent=1 // pred_fallthru
      _
    // Predicated region
    $region34: #{tpu_custom_call.1} parent=1 // pred_check
      _
    $region35: #{tpu_custom_call.1} parent=1 // pred_check_branch
      %466 = sbr.rel (0) target = $region37
    $region36: #{tpu_custom_call.1} parent=1 // pred_region
      %467 = dma.done [#allocation4], 384
    $region37: #{tpu_custom_call.1} parent=1 // pred_fallthru
      _
    %468 = vsyncpa [#allocation3], 1
    %469 = vsyncpa [#allocation6], 1
    %470 = vsyncpa [#allocation4], 1

</llo_original>
